<compile_context>
chip_gen: v7x
topology: tpu7x:2x2x1
jax: 0.10.0
libtpu: 0.0.40
codegen_flags: <defaults>
</compile_context>

<pallas_src>
import functools

import jax
import jax.numpy as jnp
from jax import lax
from jax.experimental import pallas as pl
from jax.experimental.pallas import tpu as pltpu

H1, H2 = 128, 64


def _round_up(x, m):
    return ((x + m - 1) // m) * m


def _choose_batch_tile(B, batch_tile):
    """Tile size: multiple of 256, <= batch_tile, >=2 grid steps when B>=512."""
    cap = max(256, _round_up(batch_tile, 256))
    if B >= 512:
        tb = _round_up((B + 1) // 2, 256)   # feeds both v7x TensorCores
    else:
        tb = _round_up(max(B, 1), 256)
    return min(cap, tb)


def qfunction_kernel(obs_ref, act_ref, w1o_ref, w1a_ref, b1_ref,
                     w2_ref, b2_ref, w3_ref, b3_ref, o_ref):
    """Fused MLP. Inputs batch-major (TB, D); activations feature-major (F, TB)."""
    # Contract on the feature axis of both operands: (128, Do) x (TB, Do) -> (128, TB).
    dn = (((1,), (1,)), ((), ()))
    h1 = lax.dot_general(w1o_ref[...], obs_ref[...], dn,
                         preferred_element_type=jnp.float32)
    h1 = h1 + lax.dot_general(w1a_ref[...], act_ref[...], dn,
                              preferred_element_type=jnp.float32)
    h1 = jnp.maximum(h1 + b1_ref[...], 0.0)                       # (128, TB)

    h2 = jnp.dot(w2_ref[...], h1, preferred_element_type=jnp.float32)
    h2 = jnp.maximum(h2 + b2_ref[...], 0.0)                       # (64, TB)

    q = jnp.dot(w3_ref[...], h2, preferred_element_type=jnp.float32)
    o_ref[...] = q + b3_ref[...]                                  # (1, TB) lane-dense


def init_qfunction_params(key, obs_dim, act_dim):
    """PyTorch-Linear-style init: U(-1/sqrt(fan_in), 1/sqrt(fan_in)).

    Weights stored in nn.Linear's (out_features, in_features) convention.
    """
    dims = [(H1, obs_dim + act_dim), (H2, H1), (1, H2)]
    names = ["input", "fc1", "output"]
    params = {}
    for name, (out_f, in_f) in zip(names, dims):
        key, kw, kb = jax.random.split(key, 3)
        bound = 1.0 / jnp.sqrt(jnp.float32(in_f))
        params[name] = {
            "weight": jax.random.uniform(kw, (out_f, in_f), jnp.float32,
                                         -bound, bound),
            "bias": jax.random.uniform(kb, (out_f,), jnp.float32,
                                       -bound, bound),
        }
    return params


def qfunction_forward(params, obs, act, *, batch_tile=4096):
    """JAX wrapper: only (conditional) batch padding is glue; MLP runs in Pallas."""
    obs = obs.astype(jnp.float32)
    act = act.astype(jnp.float32)
    B, obs_dim = obs.shape
    act_dim = act.shape[1]

    tb = _choose_batch_tile(B, batch_tile)
    b_pad = _round_up(B, tb)

    # Only pad when the batch is ragged; no transpose, no relayout in HBM.
    if b_pad != B:
        obs = jnp.pad(obs, ((0, b_pad - B), (0, 0)))
        act = jnp.pad(act, ((0, b_pad - B), (0, 0)))

    # Split layer-1 weight so no concat([obs, act]) buffer ever hits HBM.
    w1 = params["input"]["weight"]                                # (128, D)
    w1o = w1[:, :obs_dim]                                         # (128, obs_dim)
    w1a = w1[:, obs_dim:]                                         # (128, act_dim)
    b1 = params["input"]["bias"].reshape(-1, 1)                   # (128, 1)
    w2 = params["fc1"]["weight"]                                  # (64, 128)
    b2 = params["fc1"]["bias"].reshape(-1, 1)                     # (64, 1)
    w3 = params["output"]["weight"]                               # (1, 64)
    b3 = params["output"]["bias"].reshape(-1, 1)                  # (1, 1)

    const = lambda i: (0, 0)   # weights/biases: one block, VMEM-resident
    q = pl.pallas_call(
        qfunction_kernel,
        out_shape=jax.ShapeDtypeStruct((1, b_pad), jnp.float32),
        grid=(b_pad // tb,),
        in_specs=[
            pl.BlockSpec((tb, obs_dim), lambda i: (i, 0)),        # batch-major stream
            pl.BlockSpec((tb, act_dim), lambda i: (i, 0)),
            pl.BlockSpec(w1o.shape, const),
            pl.BlockSpec(w1a.shape, const),
            pl.BlockSpec(b1.shape, const),
            pl.BlockSpec(w2.shape, const),
            pl.BlockSpec(b2.shape, const),
            pl.BlockSpec(w3.shape, const),
            pl.BlockSpec(b3.shape, const),
        ],
        out_specs=pl.BlockSpec((1, tb), lambda i: (0, i)),        # lane-dense output
        compiler_params=pltpu.CompilerParams(
            dimension_semantics=("parallel",),   # shard batch tiles across TCs
            vmem_limit_bytes=32 * 1024 * 1024,   # safe on v5e/v6e/v7x at tb<=8192
        ),
    )(obs, act, w1o, w1a, b1, w2, b2, w3, b3)

    # Padded batch columns carry bias-propagated garbage; keep only real rows.
    return q[0, :B]                                               # (B,)


def qfunction_reference(params, obs, act):
    """Pure-JAX reference matching the PyTorch forward exactly."""
    x = jnp.concatenate([obs, act], axis=-1)
    x = jax.nn.relu(x @ params["input"]["weight"].T + params["input"]["bias"])
    x = jax.nn.relu(x @ params["fc1"]["weight"].T + params["fc1"]["bias"])
    q = x @ params["output"]["weight"].T + params["output"]["bias"]
    return q.squeeze(-1)


if __name__ == "__main__":
    obs_dim, act_dim, batch = 16, 8, 8

    key = jax.random.PRNGKey(0)
    kp, ko, ka, ko2, ka2 = jax.random.split(key, 5)

    params = init_qfunction_params(kp, obs_dim, act_dim)
    obs = jax.random.normal(ko, (batch, obs_dim), jnp.float32)
    act = jax.random.normal(ka, (batch, act_dim), jnp.float32)

    fwd = jax.jit(functools.partial(qfunction_forward, batch_tile=4096))
    q = fwd(params, obs, act)
    jax.block_until_ready(q)

    q_ref = qfunction_reference(params, obs, act)
    assert q.shape == (batch,), q.shape
    assert jnp.allclose(q, q_ref, atol=1e-4, rtol=1e-5), (q, q_ref)

    # Exercise the multi-tile + ragged-batch path (tb=256, grid=(2,), B % tb != 0).
    batch2 = 300
    obs2 = jax.random.normal(ko2, (batch2, obs_dim), jnp.float32)
    act2 = jax.random.normal(ka2, (batch2, act_dim), jnp.float32)
    fwd2 = jax.jit(functools.partial(qfunction_forward, batch_tile=256))
    q2 = fwd2(params, obs2, act2)
    jax.block_until_ready(q2)
    q2_ref = qfunction_reference(params, obs2, act2)
    assert q2.shape == (batch2,), q2.shape
    assert jnp.allclose(q2, q2_ref, atol=1e-4, rtol=1e-5), (q2, q2_ref)

    print("KERNEL_OK")
</pallas_src>

<mosaic_0001>
module attributes {stable_mosaic.version = 11 : i64} {
  func.func @qfunction_kernel(%arg0: i32, %arg1: memref<256x16xf32, #tpu.memory_space<vmem>>, %arg2: memref<256x8xf32, #tpu.memory_space<vmem>>, %arg3: memref<128x16xf32, #tpu.memory_space<vmem>>, %arg4: memref<128x8xf32, #tpu.memory_space<vmem>>, %arg5: memref<128x1xf32, #tpu.memory_space<vmem>>, %arg6: memref<64x128xf32, #tpu.memory_space<vmem>>, %arg7: memref<64x1xf32, #tpu.memory_space<vmem>>, %arg8: memref<1x64xf32, #tpu.memory_space<vmem>>, %arg9: memref<1x1xf32, #tpu.memory_space<vmem>>, %arg10: memref<1x256xf32, #tpu.memory_space<vmem>>) attributes {dimension_semantics = [#tpu.dimension_semantics<parallel>], iteration_bounds = array<i64: 1>, scalar_prefetch = 0 : i64, scratch_operands = 0 : i64, tpu.core_type = #tpu.core_type<tc>, window_params = [{transform_indices = @transform_0, window_bounds = array<i64: 256, 16>}, {transform_indices = @transform_1, window_bounds = array<i64: 256, 8>}, {pipeline_mode = #tpu.pipeline_mode<synchronous>, transform_indices = @transform_2, window_bounds = array<i64: 128, 16>}, {pipeline_mode = #tpu.pipeline_mode<synchronous>, transform_indices = @transform_3, window_bounds = array<i64: 128, 8>}, {pipeline_mode = #tpu.pipeline_mode<synchronous>, transform_indices = @transform_4, window_bounds = array<i64: 128, 1>}, {pipeline_mode = #tpu.pipeline_mode<synchronous>, transform_indices = @transform_5, window_bounds = array<i64: 64, 128>}, {pipeline_mode = #tpu.pipeline_mode<synchronous>, transform_indices = @transform_6, window_bounds = array<i64: 64, 1>}, {pipeline_mode = #tpu.pipeline_mode<synchronous>, transform_indices = @transform_7, window_bounds = array<i64: 1, 64>}, {pipeline_mode = #tpu.pipeline_mode<synchronous>, transform_indices = @transform_8, window_bounds = array<i64: 1, 1>}, {transform_indices = @transform_9, window_bounds = array<i64: 1, 256>}]} {
    %c0 = arith.constant 0 : index
    %c0_0 = arith.constant 0 : index
    %0 = vector.load %arg3[%c0, %c0_0] : memref<128x16xf32, #tpu.memory_space<vmem>>, vector<128x16xf32>
    %c0_1 = arith.constant 0 : index
    %c0_2 = arith.constant 0 : index
    %1 = vector.load %arg1[%c0_1, %c0_2] : memref<256x16xf32, #tpu.memory_space<vmem>>, vector<256x16xf32>
    %cst = arith.constant dense<0.000000e+00> : vector<128x256xf32>
    %2 = tpu.matmul %0, %1, %cst {dimension_numbers = #tpu.dot_dimension_numbers<[1], [1], [0], [0], [0, 0, 1, 0], [], []>} : vector<128x16xf32>, vector<256x16xf32>, vector<128x256xf32> -> vector<128x256xf32>
    %c0_3 = arith.constant 0 : index
    %c0_4 = arith.constant 0 : index
    %3 = vector.load %arg4[%c0_3, %c0_4] : memref<128x8xf32, #tpu.memory_space<vmem>>, vector<128x8xf32>
    %c0_5 = arith.constant 0 : index
    %c0_6 = arith.constant 0 : index
    %4 = vector.load %arg2[%c0_5, %c0_6] : memref<256x8xf32, #tpu.memory_space<vmem>>, vector<256x8xf32>
    %cst_7 = arith.constant dense<0.000000e+00> : vector<128x256xf32>
    %5 = tpu.matmul %3, %4, %cst_7 {dimension_numbers = #tpu.dot_dimension_numbers<[1], [1], [0], [0], [0, 0, 1, 0], [], []>} : vector<128x8xf32>, vector<256x8xf32>, vector<128x256xf32> -> vector<128x256xf32>
    %6 = arith.addf %2, %5 : vector<128x256xf32>
    %c0_8 = arith.constant 0 : index
    %c0_9 = arith.constant 0 : index
    %7 = vector.load %arg5[%c0_8, %c0_9] : memref<128x1xf32, #tpu.memory_space<vmem>>, vector<128x1xf32>
    %8 = vector.broadcast %7 : vector<128x1xf32> to vector<128x256xf32>
    %9 = arith.addf %6, %8 : vector<128x256xf32>
    %cst_10 = arith.constant 0.000000e+00 : f32
    %10 = vector.broadcast %cst_10 : f32 to vector<128x256xf32>
    %11 = arith.maximumf %9, %10 : vector<128x256xf32>
    %c0_11 = arith.constant 0 : index
    %c0_12 = arith.constant 0 : index
    %12 = vector.load %arg6[%c0_11, %c0_12] : memref<64x128xf32, #tpu.memory_space<vmem>>, vector<64x128xf32>
    %cst_13 = arith.constant dense<0.000000e+00> : vector<64x256xf32>
    %13 = tpu.matmul %12, %11, %cst_13 {dimension_numbers = #tpu.dot_dimension_numbers<[1], [0], [0], [1], [0, 0, 1, 1], [], []>} : vector<64x128xf32>, vector<128x256xf32>, vector<64x256xf32> -> vector<64x256xf32>
    %c0_14 = arith.constant 0 : index
    %c0_15 = arith.constant 0 : index
    %14 = vector.load %arg7[%c0_14, %c0_15] : memref<64x1xf32, #tpu.memory_space<vmem>>, vector<64x1xf32>
    %15 = vector.broadcast %14 : vector<64x1xf32> to vector<64x256xf32>
    %16 = arith.addf %13, %15 : vector<64x256xf32>
    %cst_16 = arith.constant 0.000000e+00 : f32
    %17 = vector.broadcast %cst_16 : f32 to vector<64x256xf32>
    %18 = arith.maximumf %16, %17 : vector<64x256xf32>
    %c0_17 = arith.constant 0 : index
    %c0_18 = arith.constant 0 : index
    %19 = vector.load %arg8[%c0_17, %c0_18] : memref<1x64xf32, #tpu.memory_space<vmem>>, vector<1x64xf32>
    %cst_19 = arith.constant dense<0.000000e+00> : vector<1x256xf32>
    %20 = tpu.matmul %19, %18, %cst_19 {dimension_numbers = #tpu.dot_dimension_numbers<[1], [0], [0], [1], [0, 0, 1, 1], [], []>} : vector<1x64xf32>, vector<64x256xf32>, vector<1x256xf32> -> vector<1x256xf32>
    %c0_20 = arith.constant 0 : index
    %c0_21 = arith.constant 0 : index
    %21 = vector.load %arg9[%c0_20, %c0_21] : memref<1x1xf32, #tpu.memory_space<vmem>>, vector<1x1xf32>
    %22 = vector.broadcast %21 : vector<1x1xf32> to vector<1x256xf32>
    %23 = arith.addf %20, %22 : vector<1x256xf32>
    %c0_22 = arith.constant 0 : index
    %c0_23 = arith.constant 0 : index
    %24 = vector.load %arg10[%c0_22, %c0_23] : memref<1x256xf32, #tpu.memory_space<vmem>>, vector<1x256xf32>
    tpu.vector_store %arg10[%c0_22, %c0_23], %23 {strides = array<i32>} : memref<1x256xf32, #tpu.memory_space<vmem>>, vector<1x256xf32>,
    return
  }
  func.func @transform_0(%arg0: i32) -> (i32, i32) {
    %c0_i32 = arith.constant 0 : i32
    %c0_i32_0 = arith.constant 0 : i32
    return %arg0, %c0_i32 : i32, i32
  }
  func.func @transform_1(%arg0: i32) -> (i32, i32) {
    %c0_i32 = arith.constant 0 : i32
    %c0_i32_0 = arith.constant 0 : i32
    return %arg0, %c0_i32 : i32, i32
  }
  func.func @transform_2(%arg0: i32) -> (i32, i32) {
    %c0_i32 = arith.constant 0 : i32
    %c0_i32_0 = arith.constant 0 : i32
    %c0_i32_1 = arith.constant 0 : i32
    return %c0_i32, %c0_i32_0 : i32, i32
  }
  func.func @transform_3(%arg0: i32) -> (i32, i32) {
    %c0_i32 = arith.constant 0 : i32
    %c0_i32_0 = arith.constant 0 : i32
    %c0_i32_1 = arith.constant 0 : i32
    return %c0_i32, %c0_i32_0 : i32, i32
  }
  func.func @transform_4(%arg0: i32) -> (i32, i32) {
    %c0_i32 = arith.constant 0 : i32
    %c0_i32_0 = arith.constant 0 : i32
    %c0_i32_1 = arith.constant 0 : i32
    return %c0_i32, %c0_i32_0 : i32, i32
  }
  func.func @transform_5(%arg0: i32) -> (i32, i32) {
    %c0_i32 = arith.constant 0 : i32
    %c0_i32_0 = arith.constant 0 : i32
    %c0_i32_1 = arith.constant 0 : i32
    return %c0_i32, %c0_i32_0 : i32, i32
  }
  func.func @transform_6(%arg0: i32) -> (i32, i32) {
    %c0_i32 = arith.constant 0 : i32
    %c0_i32_0 = arith.constant 0 : i32
    %c0_i32_1 = arith.constant 0 : i32
    return %c0_i32, %c0_i32_0 : i32, i32
  }
  func.func @transform_7(%arg0: i32) -> (i32, i32) {
    %c0_i32 = arith.constant 0 : i32
    %c0_i32_0 = arith.constant 0 : i32
    %c0_i32_1 = arith.constant 0 : i32
    return %c0_i32, %c0_i32_0 : i32, i32
  }
  func.func @transform_8(%arg0: i32) -> (i32, i32) {
    %c0_i32 = arith.constant 0 : i32
    %c0_i32_0 = arith.constant 0 : i32
    %c0_i32_1 = arith.constant 0 : i32
    return %c0_i32, %c0_i32_0 : i32, i32
  }
  func.func @transform_9(%arg0: i32) -> (i32, i32) {
    %c0_i32 = arith.constant 0 : i32
    %c0_i32_0 = arith.constant 0 : i32
    return %c0_i32, %arg0 : i32, i32
  }
}

</mosaic_0001>

<llo_original>
// kernel: qfunction_forward.1
$region0: #{qfunction_forward.1}
  #allocation0 [shape = 'u32[]', space=smem, size = 0x4, offset = 0x4, fixed_abs, tag = 'smem constant byte address 0x4 - core index']
  #allocation1 [shape = 'u32[144,128]{1,0:T(1,128)}', space=vmem, size = 0x12000, scoped, tag = 'internal scratch']
  #allocation2 [shape = 'f32[1,1]{1,0:T(1,128)S(1)}', space=vmem, size = 0x200, scoped, tag = 'scoped memory for qfunction_forward.1']
  %s0 = inlined_call_operand.vmem [shape: f32[256,16], index: 0, kind: input, shape index: {}]
  %s1 = inlined_call_operand.vmem [shape: f32[256,8], index: 1, kind: input, shape index: {}]
  %s2 = inlined_call_operand.vmem [shape: f32[128,16], index: 2, kind: input, shape index: {}]
  %s3 = inlined_call_operand.vmem [shape: f32[128,8], index: 3, kind: input, shape index: {}]
  %s4 = inlined_call_operand.vmem [shape: f32[128,1], index: 4, kind: input, shape index: {}]
  %s5 = inlined_call_operand.vmem [shape: f32[64,128], index: 5, kind: input, shape index: {}]
  %s6 = inlined_call_operand.vmem [shape: f32[64,1], index: 6, kind: input, shape index: {}]
  %s7 = inlined_call_operand.vmem [shape: f32[1,64], index: 7, kind: input, shape index: {}]
  %s8 = inlined_call_operand.<no memory space> [shape: f32[1,1], index: 8, kind: input, shape index: {}]
  %s9 = inlined_call_operand.vmem [shape: f32[1,256], index: 9, kind: output, shape index: {}]
  %s10 = sld [smem:[#allocation0]]
  $region46: #{qfunction_forward.1} parent=0
    _
  %s12 = ssub.s32 1, %s10
  %s13 = scalar_select 0, %s12, %s10
  %v14 = vstv %s8
  %15 = vst [vmem:[#allocation2] sm:$0x1] %v14
  // Predicated region
  $region2: #{qfunction_forward.1} parent=0 // pred_check
    _
  $region3: #{qfunction_forward.1} parent=0 // pred_check_branch
    %17 = sbr.rel (0) target = $region5
  $region4: #{qfunction_forward.1} parent=0 // pred_region
    _
  $region5: #{qfunction_forward.1} parent=0 // pred_fallthru
    _
  // Predicated region
  $region6: #{qfunction_forward.1} parent=0 // pred_check
    _
  $region7: #{qfunction_forward.1} parent=0 // pred_check_branch
    %19 = sbr.rel (0) target = $region9
  $region8: #{qfunction_forward.1} parent=0 // pred_region
    _
  $region9: #{qfunction_forward.1} parent=0 // pred_fallthru
    _
  // Predicated region
  $region10: #{qfunction_forward.1} parent=0 // pred_check
    _
  $region11: #{qfunction_forward.1} parent=0 // pred_check_branch
    %21 = sbr.rel (0) target = $region13
  $region12: #{qfunction_forward.1} parent=0 // pred_region
    _
  $region13: #{qfunction_forward.1} parent=0 // pred_fallthru
    _
  // Predicated region
  $region14: #{qfunction_forward.1} parent=0 // pred_check
    _
  $region15: #{qfunction_forward.1} parent=0 // pred_check_branch
    %23 = sbr.rel (0) target = $region17
  $region16: #{qfunction_forward.1} parent=0 // pred_region
    _
  $region17: #{qfunction_forward.1} parent=0 // pred_fallthru
    _
  // Predicated region
  $region18: #{qfunction_forward.1} parent=0 // pred_check
    _
  $region19: #{qfunction_forward.1} parent=0 // pred_check_branch
    %25 = sbr.rel (0) target = $region21
  $region20: #{qfunction_forward.1} parent=0 // pred_region
    _
  $region21: #{qfunction_forward.1} parent=0 // pred_fallthru
    _
  // Predicated region
  $region22: #{qfunction_forward.1} parent=0 // pred_check
    _
  $region23: #{qfunction_forward.1} parent=0 // pred_check_branch
    %27 = sbr.rel (0) target = $region25
  $region24: #{qfunction_forward.1} parent=0 // pred_region
    _
  $region25: #{qfunction_forward.1} parent=0 // pred_fallthru
    _
  // Predicated region
  $region26: #{qfunction_forward.1} parent=0 // pred_check
    _
  $region27: #{qfunction_forward.1} parent=0 // pred_check_branch
    %29 = sbr.rel (0) target = $region29
  $region28: #{qfunction_forward.1} parent=0 // pred_region
    _
  $region29: #{qfunction_forward.1} parent=0 // pred_fallthru
    _
  // Predicated region
  $region30: #{qfunction_forward.1} parent=0 // pred_check
    _
  $region31: #{qfunction_forward.1} parent=0 // pred_check_branch
    %31 = sbr.rel (0) target = $region33
  $region32: #{qfunction_forward.1} parent=0 // pred_region
    _
  $region33: #{qfunction_forward.1} parent=0 // pred_fallthru
    _
  // Predicated region
  $region34: #{qfunction_forward.1} parent=0 // pred_check
    _
  $region35: #{qfunction_forward.1} parent=0 // pred_check_branch
    %33 = sbr.rel (0) target = $region37
  $region36: #{qfunction_forward.1} parent=0 // pred_region
    _
  $region37: #{qfunction_forward.1} parent=0 // pred_fallthru
    _
  %v34 = vld [vmem:[%s2] sm:$0xff]
  %v35 = vld [vmem:[%s2 + $0x8] sm:$0xff]
  %v36 = vld [vmem:[%s2 + $0x10] sm:$0xff]
  %v37 = vld [vmem:[%s2 + $0x18] sm:$0xff]
  %v38 = vld [vmem:[%s2 + $0x20] sm:$0xff]
  %v39 = vld [vmem:[%s2 + $0x28] sm:$0xff]
  %v40 = vld [vmem:[%s2 + $0x30] sm:$0xff]
  %v41 = vld [vmem:[%s2 + $0x38] sm:$0xff]
  %v42 = vld [vmem:[%s2 + $0x40] sm:$0xff]
  %v43 = vld [vmem:[%s2 + $0x48] sm:$0xff]
  %v44 = vld [vmem:[%s2 + $0x50] sm:$0xff]
  %v45 = vld [vmem:[%s2 + $0x58] sm:$0xff]
  %v46 = vld [vmem:[%s2 + $0x60] sm:$0xff]
  %v47 = vld [vmem:[%s2 + $0x68] sm:$0xff]
  %v48 = vld [vmem:[%s2 + $0x70] sm:$0xff]
  %v49 = vld [vmem:[%s2 + $0x78] sm:$0xff]
  %v50 = vld [vmem:[%s0] sm:$0xff]
  %v51 = vld [vmem:[%s0 + $0x8] sm:$0xff]
  %v52 = vld [vmem:[%s0 + $0x10] sm:$0xff]
  %v53 = vld [vmem:[%s0 + $0x18] sm:$0xff]
  %v54 = vld [vmem:[%s0 + $0x20] sm:$0xff]
  %v55 = vld [vmem:[%s0 + $0x28] sm:$0xff]
  %v56 = vld [vmem:[%s0 + $0x30] sm:$0xff]
  %v57 = vld [vmem:[%s0 + $0x38] sm:$0xff]
  %v58 = vld [vmem:[%s0 + $0x40] sm:$0xff]
  %v59 = vld [vmem:[%s0 + $0x48] sm:$0xff]
  %v60 = vld [vmem:[%s0 + $0x50] sm:$0xff]
  %v61 = vld [vmem:[%s0 + $0x58] sm:$0xff]
  %v62 = vld [vmem:[%s0 + $0x60] sm:$0xff]
  %v63 = vld [vmem:[%s0 + $0x68] sm:$0xff]
  %v64 = vld [vmem:[%s0 + $0x70] sm:$0xff]
  %v65 = vld [vmem:[%s0 + $0x78] sm:$0xff]
  %v66 = vld [vmem:[%s0 + $0x80] sm:$0xff]
  %v67 = vld [vmem:[%s0 + $0x88] sm:$0xff]
  %v68 = vld [vmem:[%s0 + $0x90] sm:$0xff]
  %v69 = vld [vmem:[%s0 + $0x98] sm:$0xff]
  %v70 = vld [vmem:[%s0 + $0xa0] sm:$0xff]
  %v71 = vld [vmem:[%s0 + $0xa8] sm:$0xff]
  %v72 = vld [vmem:[%s0 + $0xb0] sm:$0xff]
  %v73 = vld [vmem:[%s0 + $0xb8] sm:$0xff]
  %v74 = vld [vmem:[%s0 + $0xc0] sm:$0xff]
  %v75 = vld [vmem:[%s0 + $0xc8] sm:$0xff]
  %v76 = vld [vmem:[%s0 + $0xd0] sm:$0xff]
  %v77 = vld [vmem:[%s0 + $0xd8] sm:$0xff]
  %v78 = vld [vmem:[%s0 + $0xe0] sm:$0xff]
  %v79 = vld [vmem:[%s0 + $0xe8] sm:$0xff]
  %v80 = vld [vmem:[%s0 + $0xf0] sm:$0xff]
  %v81 = vld [vmem:[%s0 + $0xf8] sm:$0xff]
  %v82 = vld [vmem:[%s3] sm:$0xff]
  %v83 = vld [vmem:[%s3 + $0x8] sm:$0xff]
  %v84 = vld [vmem:[%s3 + $0x10] sm:$0xff]
  %v85 = vld [vmem:[%s3 + $0x18] sm:$0xff]
  %v86 = vld [vmem:[%s3 + $0x20] sm:$0xff]
  %v87 = vld [vmem:[%s3 + $0x28] sm:$0xff]
  %v88 = vld [vmem:[%s3 + $0x30] sm:$0xff]
  %v89 = vld [vmem:[%s3 + $0x38] sm:$0xff]
  %v90 = vld [vmem:[%s3 + $0x40] sm:$0xff]
  %v91 = vld [vmem:[%s3 + $0x48] sm:$0xff]
  %v92 = vld [vmem:[%s3 + $0x50] sm:$0xff]
  %v93 = vld [vmem:[%s3 + $0x58] sm:$0xff]
  %v94 = vld [vmem:[%s3 + $0x60] sm:$0xff]
  %v95 = vld [vmem:[%s3 + $0x68] sm:$0xff]
  %v96 = vld [vmem:[%s3 + $0x70] sm:$0xff]
  %v97 = vld [vmem:[%s3 + $0x78] sm:$0xff]
  %v98 = vld [vmem:[%s1] sm:$0xff]
  %v99 = vld [vmem:[%s1 + $0x8] sm:$0xff]
  %v100 = vld [vmem:[%s1 + $0x10] sm:$0xff]
  %v101 = vld [vmem:[%s1 + $0x18] sm:$0xff]
  %v102 = vld [vmem:[%s1 + $0x20] sm:$0xff]
  %v103 = vld [vmem:[%s1 + $0x28] sm:$0xff]
  %v104 = vld [vmem:[%s1 + $0x30] sm:$0xff]
  %v105 = vld [vmem:[%s1 + $0x38] sm:$0xff]
  %v106 = vld [vmem:[%s1 + $0x40] sm:$0xff]
  %v107 = vld [vmem:[%s1 + $0x48] sm:$0xff]
  %v108 = vld [vmem:[%s1 + $0x50] sm:$0xff]
  %v109 = vld [vmem:[%s1 + $0x58] sm:$0xff]
  %v110 = vld [vmem:[%s1 + $0x60] sm:$0xff]
  %v111 = vld [vmem:[%s1 + $0x68] sm:$0xff]
  %v112 = vld [vmem:[%s1 + $0x70] sm:$0xff]
  %v113 = vld [vmem:[%s1 + $0x78] sm:$0xff]
  %v114 = vld [vmem:[%s1 + $0x80] sm:$0xff]
  %v115 = vld [vmem:[%s1 + $0x88] sm:$0xff]
  %v116 = vld [vmem:[%s1 + $0x90] sm:$0xff]
  %v117 = vld [vmem:[%s1 + $0x98] sm:$0xff]
  %v118 = vld [vmem:[%s1 + $0xa0] sm:$0xff]
  %v119 = vld [vmem:[%s1 + $0xa8] sm:$0xff]
  %v120 = vld [vmem:[%s1 + $0xb0] sm:$0xff]
  %v121 = vld [vmem:[%s1 + $0xb8] sm:$0xff]
  %v122 = vld [vmem:[%s1 + $0xc0] sm:$0xff]
  %v123 = vld [vmem:[%s1 + $0xc8] sm:$0xff]
  %v124 = vld [vmem:[%s1 + $0xd0] sm:$0xff]
  %v125 = vld [vmem:[%s1 + $0xd8] sm:$0xff]
  %v126 = vld [vmem:[%s1 + $0xe0] sm:$0xff]
  %v127 = vld [vmem:[%s1 + $0xe8] sm:$0xff]
  %v128 = vld [vmem:[%s1 + $0xf0] sm:$0xff]
  %v129 = vld [vmem:[%s1 + $0xf8] sm:$0xff]
  %vm130 = vcmask 64512
  %v132 = vsel %vm130, %v82, 0
  %v135 = vsel %vm130, %v83, 0
  %v138 = vsel %vm130, %v84, 0
  %v141 = vsel %vm130, %v85, 0
  %v144 = vsel %vm130, %v86, 0
  %v147 = vsel %vm130, %v87, 0
  %v150 = vsel %vm130, %v88, 0
  %v153 = vsel %vm130, %v89, 0
  %v156 = vsel %vm130, %v90, 0
  %v159 = vsel %vm130, %v91, 0
  %v162 = vsel %vm130, %v92, 0
  %v165 = vsel %vm130, %v93, 0
  %v168 = vsel %vm130, %v94, 0
  %v171 = vsel %vm130, %v95, 0
  %v174 = vsel %vm130, %v96, 0
  %v177 = vsel %vm130, %v97, 0
  %v180 = vsel %vm130, %v98, 0
  %v183 = vsel %vm130, %v99, 0
  %v186 = vsel %vm130, %v100, 0
  %v189 = vsel %vm130, %v101, 0
  %v192 = vsel %vm130, %v102, 0
  %v195 = vsel %vm130, %v103, 0
  %v198 = vsel %vm130, %v104, 0
  %v201 = vsel %vm130, %v105, 0
  %v204 = vsel %vm130, %v106, 0
  %v207 = vsel %vm130, %v107, 0
  %v210 = vsel %vm130, %v108, 0
  %v213 = vsel %vm130, %v109, 0
  %v216 = vsel %vm130, %v110, 0
  %v219 = vsel %vm130, %v111, 0
  %v222 = vsel %vm130, %v112, 0
  %v225 = vsel %vm130, %v113, 0
  %v228 = vsel %vm130, %v114, 0
  %v231 = vsel %vm130, %v115, 0
  %v234 = vsel %vm130, %v116, 0
  %v237 = vsel %vm130, %v117, 0
  %v240 = vsel %vm130, %v118, 0
  %v243 = vsel %vm130, %v119, 0
  %v246 = vsel %vm130, %v120, 0
  %v249 = vsel %vm130, %v121, 0
  %v252 = vsel %vm130, %v122, 0
  %v255 = vsel %vm130, %v123, 0
  %v258 = vsel %vm130, %v124, 0
  %v261 = vsel %vm130, %v125, 0
  %v264 = vsel %vm130, %v126, 0
  %v267 = vsel %vm130, %v127, 0
  %v270 = vsel %vm130, %v128, 0
  %v273 = vsel %vm130, %v129, 0
  %275 = vmatprep.subr.mxu0 0.0
  %276 = vmatpush1.xpose.msra.mxu0 %v180
  %277 = vmatprep.subr.mxu0 0.0
  %278 = vmatpush1.xpose.msra.mxu0 %v183
  %279 = vmatprep.subr.mxu0 0.0
  %280 = vmatpush1.xpose.msra.mxu0 %v186
  %281 = vmatprep.subr.mxu0 0.0
  %282 = vmatpush1.xpose.msra.mxu0 %v189
  %283 = vmatprep.subr.mxu0 0.0
  %284 = vmatpush1.xpose.msra.mxu0 %v192
  %285 = vmatprep.subr.mxu0 0.0
  %286 = vmatpush1.xpose.msra.mxu0 %v195
  %287 = vmatprep.subr.mxu0 0.0
  %288 = vmatpush1.xpose.msra.mxu0 %v198
  %289 = vmatprep.subr.mxu0 0.0
  %290 = vmatpush1.xpose.msra.mxu0 %v201
  %291 = vmatprep.subr.mxu0 0.0
  %292 = vmatpush1.xpose.msra.mxu0 %v204
  %293 = vmatprep.subr.mxu0 0.0
  %294 = vmatpush1.xpose.msra.mxu0 %v207
  %295 = vmatprep.subr.mxu0 0.0
  %296 = vmatpush1.xpose.msra.mxu0 %v210
  %297 = vmatprep.subr.mxu0 0.0
  %298 = vmatpush1.xpose.msra.mxu0 %v213
  %299 = vmatprep.subr.mxu0 0.0
  %300 = vmatpush1.xpose.msra.mxu0 %v216
  %301 = vmatprep.subr.mxu0 0.0
  %302 = vmatpush1.xpose.msra.mxu0 %v219
  %303 = vmatprep.subr.mxu0 0.0
  %304 = vmatpush1.xpose.msra.mxu0 %v222
  %305 = vmatprep.subr.mxu0 0.0
  %306 = vmatpush1.xpose.msra.mxu0 %v225
  %307 = vmatprep.subr.mxu0 0.0
  %308 = vmatpush1.xpose.msra.mxu0 %v228
  %309 = vmatprep.subr.mxu0 0.0
  %310 = vmatpush1.xpose.msra.mxu0 %v231
  %311 = vmatprep.subr.mxu0 0.0
  %312 = vmatpush1.xpose.msra.mxu0 %v234
  %313 = vmatprep.subr.mxu0 0.0
  %314 = vmatpush1.xpose.msra.mxu0 %v237
  %315 = vmatprep.subr.mxu0 0.0
  %316 = vmatpush1.xpose.msra.mxu0 %v240
  %317 = vmatprep.subr.mxu0 0.0
  %318 = vmatpush1.xpose.msra.mxu0 %v243
  %319 = vmatprep.subr.mxu0 0.0
  %320 = vmatpush1.xpose.msra.mxu0 %v246
  %321 = vmatprep.subr.mxu0 0.0
  %322 = vmatpush1.xpose.msra.mxu0 %v249
  %323 = vmatprep.subr.mxu0 0.0
  %324 = vmatpush1.xpose.msra.mxu0 %v252
  %325 = vmatprep.subr.mxu0 0.0
  %326 = vmatpush1.xpose.msra.mxu0 %v255
  %327 = vmatprep.subr.mxu0 0.0
  %328 = vmatpush1.xpose.msra.mxu0 %v258
  %329 = vmatprep.subr.mxu0 0.0
  %330 = vmatpush1.xpose.msra.mxu0 %v261
  %331 = vmatprep.subr.mxu0 0.0
  %332 = vmatpush1.xpose.msra.mxu0 %v264
  %333 = vmatprep.subr.mxu0 0.0
  %334 = vmatpush1.xpose.msra.mxu0 %v267
  %335 = vmatprep.subr.mxu0 0.0
  %336 = vmatpush1.xpose.msra.mxu0 %v270
  %337 = vmatprep.subr.mxu0 0.0
  %338 = vmatpush1.xpose.msra.mxu0 %v273
  %339 = vmatprep.mubr.f32.mxu0 0.0
  %340 = vmatmul.mubr.f32.gmra.mrb[0].mxu0 %v132
  %v341 = vpop.f32.mrb[0].mxu0
  %v342 = vadd.f32 0.0, %v341
  %v343 = vpop.f32.mrb[0].mxu0
  %v344 = vadd.f32 0.0, %v343
  %345 = vmatprep.mubr.f32.mxu0 0.0
  %346 = vmatmul.mubr.f32.gmra.mrb[0].mxu0 %v135
  %v347 = vpop.f32.mrb[0].mxu0
  %v348 = vadd.f32 0.0, %v347
  %v349 = vpop.f32.mrb[0].mxu0
  %v350 = vadd.f32 0.0, %v349
  %351 = vmatprep.mubr.f32.mxu0 0.0
  %352 = vmatmul.mubr.f32.gmra.mrb[0].mxu0 %v138
  %v353 = vpop.f32.mrb[0].mxu0
  %v354 = vadd.f32 0.0, %v353
  %v355 = vpop.f32.mrb[0].mxu0
  %v356 = vadd.f32 0.0, %v355
  %357 = vmatprep.mubr.f32.mxu0 0.0
  %358 = vmatmul.mubr.f32.gmra.mrb[0].mxu0 %v141
  %v359 = vpop.f32.mrb[0].mxu0
  %v360 = vadd.f32 0.0, %v359
  %v361 = vpop.f32.mrb[0].mxu0
  %v362 = vadd.f32 0.0, %v361
  %363 = vmatprep.mubr.f32.mxu0 0.0
  %364 = vmatmul.mubr.f32.gmra.mrb[0].mxu0 %v144
  %v365 = vpop.f32.mrb[0].mxu0
  %v366 = vadd.f32 0.0, %v365
  %v367 = vpop.f32.mrb[0].mxu0
  %v368 = vadd.f32 0.0, %v367
  %369 = vmatprep.mubr.f32.mxu0 0.0
  %370 = vmatmul.mubr.f32.gmra.mrb[0].mxu0 %v147
  %v371 = vpop.f32.mrb[0].mxu0
  %v372 = vadd.f32 0.0, %v371
  %v373 = vpop.f32.mrb[0].mxu0
  %v374 = vadd.f32 0.0, %v373
  %375 = vmatprep.mubr.f32.mxu0 0.0
  %376 = vmatmul.mubr.f32.gmra.mrb[0].mxu0 %v150
  %v377 = vpop.f32.mrb[0].mxu0
  %v378 = vadd.f32 0.0, %v377
  %v379 = vpop.f32.mrb[0].mxu0
  %v380 = vadd.f32 0.0, %v379
  %381 = vmatprep.mubr.f32.mxu0 0.0
  %382 = vmatmul.mubr.f32.gmra.mrb[0].mxu0 %v153
  %v383 = vpop.f32.mrb[0].mxu0
  %v384 = vadd.f32 0.0, %v383
  %v385 = vpop.f32.mrb[0].mxu0
  %v386 = vadd.f32 0.0, %v385
  %387 = vmatprep.mubr.f32.mxu0 0.0
  %388 = vmatmul.mubr.f32.gmra.mrb[0].mxu0 %v156
  %v389 = vpop.f32.mrb[0].mxu0
  %v390 = vadd.f32 0.0, %v389
  %v391 = vpop.f32.mrb[0].mxu0
  %v392 = vadd.f32 0.0, %v391
  %393 = vmatprep.mubr.f32.mxu0 0.0
  %394 = vmatmul.mubr.f32.gmra.mrb[0].mxu0 %v159
  %v395 = vpop.f32.mrb[0].mxu0
  %v396 = vadd.f32 0.0, %v395
  %v397 = vpop.f32.mrb[0].mxu0
  %v398 = vadd.f32 0.0, %v397
  %399 = vmatprep.mubr.f32.mxu0 0.0
  %400 = vmatmul.mubr.f32.gmra.mrb[0].mxu0 %v162
  %v401 = vpop.f32.mrb[0].mxu0
  %v402 = vadd.f32 0.0, %v401
  %v403 = vpop.f32.mrb[0].mxu0
  %v404 = vadd.f32 0.0, %v403
  %405 = vmatprep.mubr.f32.mxu0 0.0
  %406 = vmatmul.mubr.f32.gmra.mrb[0].mxu0 %v165
  %v407 = vpop.f32.mrb[0].mxu0
  %v408 = vadd.f32 0.0, %v407
  %v409 = vpop.f32.mrb[0].mxu0
  %v410 = vadd.f32 0.0, %v409
  %411 = vmatprep.mubr.f32.mxu0 0.0
  %412 = vmatmul.mubr.f32.gmra.mrb[0].mxu0 %v168
  %v413 = vpop.f32.mrb[0].mxu0
  %v414 = vadd.f32 0.0, %v413
  %v415 = vpop.f32.mrb[0].mxu0
  %v416 = vadd.f32 0.0, %v415
  %417 = vmatprep.mubr.f32.mxu0 0.0
  %418 = vmatmul.mubr.f32.gmra.mrb[0].mxu0 %v171
  %v419 = vpop.f32.mrb[0].mxu0
  %v420 = vadd.f32 0.0, %v419
  %v421 = vpop.f32.mrb[0].mxu0
  %v422 = vadd.f32 0.0, %v421
  %423 = vmatprep.mubr.f32.mxu0 0.0
  %424 = vmatmul.mubr.f32.gmra.mrb[0].mxu0 %v174
  %v425 = vpop.f32.mrb[0].mxu0
  %v426 = vadd.f32 0.0, %v425
  %v427 = vpop.f32.mrb[0].mxu0
  %v428 = vadd.f32 0.0, %v427
  %429 = vmatprep.mubr.f32.mxu0 0.0
  %430 = vmatmul.mubr.f32.gmra.mrb[0].mxu0 %v177
  %v431 = vpop.f32.mrb[0].mxu0
  %v432 = vadd.f32 0.0, %v431
  %v433 = vpop.f32.mrb[0].mxu0
  %v434 = vadd.f32 0.0, %v433
  %435 = vdwg.mxu0
  %vm436 = vcmask 130048
  %v438 = vsel %vm436, %v34, 0
  %v441 = vsel %vm436, %v35, 0
  %v444 = vsel %vm436, %v36, 0
  %v447 = vsel %vm436, %v37, 0
  %v450 = vsel %vm436, %v38, 0
  %v453 = vsel %vm436, %v39, 0
  %v456 = vsel %vm436, %v40, 0
  %v459 = vsel %vm436, %v41, 0
  %v462 = vsel %vm436, %v42, 0
  %v465 = vsel %vm436, %v43, 0
  %v468 = vsel %vm436, %v44, 0
  %v471 = vsel %vm436, %v45, 0
  %v474 = vsel %vm436, %v46, 0
  %v477 = vsel %vm436, %v47, 0
  %v480 = vsel %vm436, %v48, 0
  %v483 = vsel %vm436, %v49, 0
  %v486 = vsel %vm436, %v50, 0
  %v489 = vsel %vm436, %v51, 0
  %v492 = vsel %vm436, %v52, 0
  %v495 = vsel %vm436, %v53, 0
  %v498 = vsel %vm436, %v54, 0
  %v501 = vsel %vm436, %v55, 0
  %v504 = vsel %vm436, %v56, 0
  %v507 = vsel %vm436, %v57, 0
  %v510 = vsel %vm436, %v58, 0
  %v513 = vsel %vm436, %v59, 0
  %v516 = vsel %vm436, %v60, 0
  %v519 = vsel %vm436, %v61, 0
  %v522 = vsel %vm436, %v62, 0
  %v525 = vsel %vm436, %v63, 0
  %v528 = vsel %vm436, %v64, 0
  %v531 = vsel %vm436, %v65, 0
  %v534 = vsel %vm436, %v66, 0
  %v537 = vsel %vm436, %v67, 0
  %v540 = vsel %vm436, %v68, 0
  %v543 = vsel %vm436, %v69, 0
  %v546 = vsel %vm436, %v70, 0
  %v549 = vsel %vm436, %v71, 0
  %v552 = vsel %vm436, %v72, 0
  %v555 = vsel %vm436, %v73, 0
  %v558 = vsel %vm436, %v74, 0
  %v561 = vsel %vm436, %v75, 0
  %v564 = vsel %vm436, %v76, 0
  %v567 = vsel %vm436, %v77, 0
  %v570 = vsel %vm436, %v78, 0
  %v573 = vsel %vm436, %v79, 0
  %v576 = vsel %vm436, %v80, 0
  %v579 = vsel %vm436, %v81, 0
  %581 = vmatprep.subr.mxu0 0.0
  %582 = vmatpush1.xpose.msra.mxu0 %v486
  %583 = vmatprep.subr.mxu0 0.0
  %584 = vmatpush1.xpose.msra.mxu0 %v489
  %585 = vmatprep.subr.mxu0 0.0
  %586 = vmatpush1.xpose.msra.mxu0 %v492
  %587 = vmatprep.subr.mxu0 0.0
  %588 = vmatpush1.xpose.msra.mxu0 %v495
  %589 = vmatprep.subr.mxu0 0.0
  %590 = vmatpush1.xpose.msra.mxu0 %v498
  %591 = vmatprep.subr.mxu0 0.0
  %592 = vmatpush1.xpose.msra.mxu0 %v501
  %593 = vmatprep.subr.mxu0 0.0
  %594 = vmatpush1.xpose.msra.mxu0 %v504
  %595 = vmatprep.subr.mxu0 0.0
  %596 = vmatpush1.xpose.msra.mxu0 %v507
  %597 = vmatprep.subr.mxu0 0.0
  %598 = vmatpush1.xpose.msra.mxu0 %v510
  %599 = vmatprep.subr.mxu0 0.0
  %600 = vmatpush1.xpose.msra.mxu0 %v513
  %601 = vmatprep.subr.mxu0 0.0
  %602 = vmatpush1.xpose.msra.mxu0 %v516
  %603 = vmatprep.subr.mxu0 0.0
  %604 = vmatpush1.xpose.msra.mxu0 %v519
  %605 = vmatprep.subr.mxu0 0.0
  %606 = vmatpush1.xpose.msra.mxu0 %v522
  %607 = vmatprep.subr.mxu0 0.0
  %608 = vmatpush1.xpose.msra.mxu0 %v525
  %609 = vmatprep.subr.mxu0 0.0
  %610 = vmatpush1.xpose.msra.mxu0 %v528
  %611 = vmatprep.subr.mxu0 0.0
  %612 = vmatpush1.xpose.msra.mxu0 %v531
  %613 = vmatprep.subr.mxu0 0.0
  %614 = vmatpush1.xpose.msra.mxu0 %v534
  %615 = vmatprep.subr.mxu0 0.0
  %616 = vmatpush1.xpose.msra.mxu0 %v537
  %617 = vmatprep.subr.mxu0 0.0
  %618 = vmatpush1.xpose.msra.mxu0 %v540
  %619 = vmatprep.subr.mxu0 0.0
  %620 = vmatpush1.xpose.msra.mxu0 %v543
  %621 = vmatprep.subr.mxu0 0.0
  %622 = vmatpush1.xpose.msra.mxu0 %v546
  %623 = vmatprep.subr.mxu0 0.0
  %624 = vmatpush1.xpose.msra.mxu0 %v549
  %625 = vmatprep.subr.mxu0 0.0
  %626 = vmatpush1.xpose.msra.mxu0 %v552
  %627 = vmatprep.subr.mxu0 0.0
  %628 = vmatpush1.xpose.msra.mxu0 %v555
  %629 = vmatprep.subr.mxu0 0.0
  %630 = vmatpush1.xpose.msra.mxu0 %v558
  %631 = vmatprep.subr.mxu0 0.0
  %632 = vmatpush1.xpose.msra.mxu0 %v561
  %633 = vmatprep.subr.mxu0 0.0
  %634 = vmatpush1.xpose.msra.mxu0 %v564
  %635 = vmatprep.subr.mxu0 0.0
  %636 = vmatpush1.xpose.msra.mxu0 %v567
  %637 = vmatprep.subr.mxu0 0.0
  %638 = vmatpush1.xpose.msra.mxu0 %v570
  %639 = vmatprep.subr.mxu0 0.0
  %640 = vmatpush1.xpose.msra.mxu0 %v573
  %641 = vmatprep.subr.mxu0 0.0
  %642 = vmatpush1.xpose.msra.mxu0 %v576
  %643 = vmatprep.subr.mxu0 0.0
  %644 = vmatpush1.xpose.msra.mxu0 %v579
  %645 = vmatprep.mubr.f32.mxu0 0.0
  %646 = vmatmul.mubr.f32.gmra.mrb[0].mxu0 %v438
  %v647 = vpop.f32.mrb[0].mxu0
  %v648 = vadd.f32 %v342, %v647
  %v649 = vpop.f32.mrb[0].mxu0
  %v650 = vadd.f32 %v344, %v649
  %651 = vmatprep.mubr.f32.mxu0 0.0
  %652 = vmatmul.mubr.f32.gmra.mrb[0].mxu0 %v441
  %v653 = vpop.f32.mrb[0].mxu0
  %v654 = vadd.f32 %v348, %v653
  %v655 = vpop.f32.mrb[0].mxu0
  %v656 = vadd.f32 %v350, %v655
  %657 = vmatprep.mubr.f32.mxu0 0.0
  %658 = vmatmul.mubr.f32.gmra.mrb[0].mxu0 %v444
  %v659 = vpop.f32.mrb[0].mxu0
  %v660 = vadd.f32 %v354, %v659
  %v661 = vpop.f32.mrb[0].mxu0
  %v662 = vadd.f32 %v356, %v661
  %663 = vmatprep.mubr.f32.mxu0 0.0
  %664 = vmatmul.mubr.f32.gmra.mrb[0].mxu0 %v447
  %v665 = vpop.f32.mrb[0].mxu0
  %v666 = vadd.f32 %v360, %v665
  %v667 = vpop.f32.mrb[0].mxu0
  %v668 = vadd.f32 %v362, %v667
  %669 = vmatprep.mubr.f32.mxu0 0.0
  %670 = vmatmul.mubr.f32.gmra.mrb[0].mxu0 %v450
  %v671 = vpop.f32.mrb[0].mxu0
  %v672 = vadd.f32 %v366, %v671
  %v673 = vpop.f32.mrb[0].mxu0
  %v674 = vadd.f32 %v368, %v673
  %675 = vmatprep.mubr.f32.mxu0 0.0
  %676 = vmatmul.mubr.f32.gmra.mrb[0].mxu0 %v453
  %v677 = vpop.f32.mrb[0].mxu0
  %v678 = vadd.f32 %v372, %v677
  %v679 = vpop.f32.mrb[0].mxu0
  %v680 = vadd.f32 %v374, %v679
  %681 = vmatprep.mubr.f32.mxu0 0.0
  %682 = vmatmul.mubr.f32.gmra.mrb[0].mxu0 %v456
  %v683 = vpop.f32.mrb[0].mxu0
  %v684 = vadd.f32 %v378, %v683
  %v685 = vpop.f32.mrb[0].mxu0
  %v686 = vadd.f32 %v380, %v685
  %687 = vmatprep.mubr.f32.mxu0 0.0
  %688 = vmatmul.mubr.f32.gmra.mrb[0].mxu0 %v459
  %v689 = vpop.f32.mrb[0].mxu0
  %v690 = vadd.f32 %v384, %v689
  %v691 = vpop.f32.mrb[0].mxu0
  %v692 = vadd.f32 %v386, %v691
  %693 = vmatprep.mubr.f32.mxu0 0.0
  %694 = vmatmul.mubr.f32.gmra.mrb[0].mxu0 %v462
  %v695 = vpop.f32.mrb[0].mxu0
  %v696 = vadd.f32 %v390, %v695
  %v697 = vpop.f32.mrb[0].mxu0
  %v698 = vadd.f32 %v392, %v697
  %699 = vmatprep.mubr.f32.mxu0 0.0
  %700 = vmatmul.mubr.f32.gmra.mrb[0].mxu0 %v465
  %v701 = vpop.f32.mrb[0].mxu0
  %v702 = vadd.f32 %v396, %v701
  %v703 = vpop.f32.mrb[0].mxu0
  %v704 = vadd.f32 %v398, %v703
  %705 = vmatprep.mubr.f32.mxu0 0.0
  %706 = vmatmul.mubr.f32.gmra.mrb[0].mxu0 %v468
  %v707 = vpop.f32.mrb[0].mxu0
  %v708 = vadd.f32 %v402, %v707
  %v709 = vpop.f32.mrb[0].mxu0
  %v710 = vadd.f32 %v404, %v709
  %711 = vmatprep.mubr.f32.mxu0 0.0
  %712 = vmatmul.mubr.f32.gmra.mrb[0].mxu0 %v471
  %v713 = vpop.f32.mrb[0].mxu0
  %v714 = vadd.f32 %v408, %v713
  %v715 = vpop.f32.mrb[0].mxu0
  %v716 = vadd.f32 %v410, %v715
  %717 = vmatprep.mubr.f32.mxu0 0.0
  %718 = vmatmul.mubr.f32.gmra.mrb[0].mxu0 %v474
  %v719 = vpop.f32.mrb[0].mxu0
  %v720 = vadd.f32 %v414, %v719
  %v721 = vpop.f32.mrb[0].mxu0
  %v722 = vadd.f32 %v416, %v721
  %723 = vmatprep.mubr.f32.mxu0 0.0
  %724 = vmatmul.mubr.f32.gmra.mrb[0].mxu0 %v477
  %v725 = vpop.f32.mrb[0].mxu0
  %v726 = vadd.f32 %v420, %v725
  %v727 = vpop.f32.mrb[0].mxu0
  %v728 = vadd.f32 %v422, %v727
  %729 = vmatprep.mubr.f32.mxu0 0.0
  %730 = vmatmul.mubr.f32.gmra.mrb[0].mxu0 %v480
  %v731 = vpop.f32.mrb[0].mxu0
  %v732 = vadd.f32 %v426, %v731
  %v733 = vpop.f32.mrb[0].mxu0
  %v734 = vadd.f32 %v428, %v733
  %735 = vmatprep.mubr.f32.mxu0 0.0
  %736 = vmatmul.mubr.f32.gmra.mrb[0].mxu0 %v483
  %v737 = vpop.f32.mrb[0].mxu0
  %v738 = vadd.f32 %v432, %v737
  %v739 = vpop.f32.mrb[0].mxu0
  %v740 = vadd.f32 %v434, %v739
  %741 = vdwg.mxu0
  %v742 = vld [vmem:[%s4] sm:$0xff]
  %v743 = vld [vmem:[%s4 + $0x8] sm:$0xff]
  %v744 = vld [vmem:[%s4 + $0x10] sm:$0xff]
  %v745 = vld [vmem:[%s4 + $0x18] sm:$0xff]
  %v746 = vld [vmem:[%s4 + $0x20] sm:$0xff]
  %v747 = vld [vmem:[%s4 + $0x28] sm:$0xff]
  %v748 = vld [vmem:[%s4 + $0x30] sm:$0xff]
  %v749 = vld [vmem:[%s4 + $0x38] sm:$0xff]
  %v750 = vld [vmem:[%s4 + $0x40] sm:$0xff]
  %v751 = vld [vmem:[%s4 + $0x48] sm:$0xff]
  %v752 = vld [vmem:[%s4 + $0x50] sm:$0xff]
  %v753 = vld [vmem:[%s4 + $0x58] sm:$0xff]
  %v754 = vld [vmem:[%s4 + $0x60] sm:$0xff]
  %v755 = vld [vmem:[%s4 + $0x68] sm:$0xff]
  %v756 = vld [vmem:[%s4 + $0x70] sm:$0xff]
  %v757 = vld [vmem:[%s4 + $0x78] sm:$0xff]
  %759 = vset.pattern.permute.xlu0 0
  %760 = vperm.xlu0 %759, %v742
  %v761 = vpop.permute.xlu0 %760
  %764 = vset.pattern.permute.xlu0 0
  %765 = vperm.xlu0 %764, %v743
  %v766 = vpop.permute.xlu0 %765
  %769 = vset.pattern.permute.xlu0 0
  %770 = vperm.xlu0 %769, %v744
  %v771 = vpop.permute.xlu0 %770
  %774 = vset.pattern.permute.xlu0 0
  %775 = vperm.xlu0 %774, %v745
  %v776 = vpop.permute.xlu0 %775
  %779 = vset.pattern.permute.xlu0 0
  %780 = vperm.xlu0 %779, %v746
  %v781 = vpop.permute.xlu0 %780
  %784 = vset.pattern.permute.xlu0 0
  %785 = vperm.xlu0 %784, %v747
  %v786 = vpop.permute.xlu0 %785
  %789 = vset.pattern.permute.xlu0 0
  %790 = vperm.xlu0 %789, %v748
  %v791 = vpop.permute.xlu0 %790
  %794 = vset.pattern.permute.xlu0 0
  %795 = vperm.xlu0 %794, %v749
  %v796 = vpop.permute.xlu0 %795
  %799 = vset.pattern.permute.xlu0 0
  %800 = vperm.xlu0 %799, %v750
  %v801 = vpop.permute.xlu0 %800
  %804 = vset.pattern.permute.xlu0 0
  %805 = vperm.xlu0 %804, %v751
  %v806 = vpop.permute.xlu0 %805
  %809 = vset.pattern.permute.xlu0 0
  %810 = vperm.xlu0 %809, %v752
  %v811 = vpop.permute.xlu0 %810
  %814 = vset.pattern.permute.xlu0 0
  %815 = vperm.xlu0 %814, %v753
  %v816 = vpop.permute.xlu0 %815
  %819 = vset.pattern.permute.xlu0 0
  %820 = vperm.xlu0 %819, %v754
  %v821 = vpop.permute.xlu0 %820
  %824 = vset.pattern.permute.xlu0 0
  %825 = vperm.xlu0 %824, %v755
  %v826 = vpop.permute.xlu0 %825
  %829 = vset.pattern.permute.xlu0 0
  %830 = vperm.xlu0 %829, %v756
  %v831 = vpop.permute.xlu0 %830
  %834 = vset.pattern.permute.xlu0 0
  %835 = vperm.xlu0 %834, %v757
  %v836 = vpop.permute.xlu0 %835
  %v838 = vadd.f32 %v648, %v761
  %v839 = vadd.f32 %v650, %v761
  %v840 = vadd.f32 %v654, %v766
  %v841 = vadd.f32 %v656, %v766
  %v842 = vadd.f32 %v660, %v771
  %v843 = vadd.f32 %v662, %v771
  %v844 = vadd.f32 %v666, %v776
  %v845 = vadd.f32 %v668, %v776
  %v846 = vadd.f32 %v672, %v781
  %v847 = vadd.f32 %v674, %v781
  %v848 = vadd.f32 %v678, %v786
  %v849 = vadd.f32 %v680, %v786
  %v850 = vadd.f32 %v684, %v791
  %v851 = vadd.f32 %v686, %v791
  %v852 = vadd.f32 %v690, %v796
  %v853 = vadd.f32 %v692, %v796
  %v854 = vadd.f32 %v696, %v801
  %v855 = vadd.f32 %v698, %v801
  %v856 = vadd.f32 %v702, %v806
  %v857 = vadd.f32 %v704, %v806
  %v858 = vadd.f32 %v708, %v811
  %v859 = vadd.f32 %v710, %v811
  %v860 = vadd.f32 %v714, %v816
  %v861 = vadd.f32 %v716, %v816
  %v862 = vadd.f32 %v720, %v821
  %v863 = vadd.f32 %v722, %v821
  %v864 = vadd.f32 %v726, %v826
  %v865 = vadd.f32 %v728, %v826
  %v866 = vadd.f32 %v732, %v831
  %v867 = vadd.f32 %v734, %v831
  %v868 = vadd.f32 %v738, %v836
  %v869 = vadd.f32 %v740, %v836
  %v870 = vmax.f32 %v838, 0.0
  %v871 = vmax.f32 %v839, 0.0
  %v872 = vmax.f32 %v840, 0.0
  %v873 = vmax.f32 %v841, 0.0
  %v874 = vmax.f32 %v842, 0.0
  %v875 = vmax.f32 %v843, 0.0
  %v876 = vmax.f32 %v844, 0.0
  %v877 = vmax.f32 %v845, 0.0
  %v878 = vmax.f32 %v846, 0.0
  %v879 = vmax.f32 %v847, 0.0
  %v880 = vmax.f32 %v848, 0.0
  %v881 = vmax.f32 %v849, 0.0
  %v882 = vmax.f32 %v850, 0.0
  %v883 = vmax.f32 %v851, 0.0
  %v884 = vmax.f32 %v852, 0.0
  %v885 = vmax.f32 %v853, 0.0
  %v886 = vmax.f32 %v854, 0.0
  %v887 = vmax.f32 %v855, 0.0
  %v888 = vmax.f32 %v856, 0.0
  %v889 = vmax.f32 %v857, 0.0
  %v890 = vmax.f32 %v858, 0.0
  %v891 = vmax.f32 %v859, 0.0
  %v892 = vmax.f32 %v860, 0.0
  %v893 = vmax.f32 %v861, 0.0
  %v894 = vmax.f32 %v862, 0.0
  %v895 = vmax.f32 %v863, 0.0
  %v896 = vmax.f32 %v864, 0.0
  %v897 = vmax.f32 %v865, 0.0
  %v898 = vmax.f32 %v866, 0.0
  %v899 = vmax.f32 %v867, 0.0
  %v900 = vmax.f32 %v868, 0.0
  %v901 = vmax.f32 %v869, 0.0
  %v902 = vld [vmem:[%s5] sm:$0xff]
  %v903 = vld [vmem:[%s5 + $0x8] sm:$0xff]
  %v904 = vld [vmem:[%s5 + $0x10] sm:$0xff]
  %v905 = vld [vmem:[%s5 + $0x18] sm:$0xff]
  %v906 = vld [vmem:[%s5 + $0x20] sm:$0xff]
  %v907 = vld [vmem:[%s5 + $0x28] sm:$0xff]
  %v908 = vld [vmem:[%s5 + $0x30] sm:$0xff]
  %v909 = vld [vmem:[%s5 + $0x38] sm:$0xff]
  %v910 = vld [vmem:[%s6] sm:$0xff]
  %v911 = vld [vmem:[%s6 + $0x8] sm:$0xff]
  %v912 = vld [vmem:[%s6 + $0x10] sm:$0xff]
  %v913 = vld [vmem:[%s6 + $0x18] sm:$0xff]
  %v914 = vld [vmem:[%s6 + $0x20] sm:$0xff]
  %v915 = vld [vmem:[%s6 + $0x28] sm:$0xff]
  %v916 = vld [vmem:[%s6 + $0x30] sm:$0xff]
  %v917 = vld [vmem:[%s6 + $0x38] sm:$0xff]
  %919 = vset.pattern.permute.xlu0 0
  %920 = vperm.xlu0 %919, %v910
  %v921 = vpop.permute.xlu0 %920
  %924 = vset.pattern.permute.xlu0 0
  %925 = vperm.xlu0 %924, %v911
  %v926 = vpop.permute.xlu0 %925
  %929 = vset.pattern.permute.xlu0 0
  %930 = vperm.xlu0 %929, %v912
  %v931 = vpop.permute.xlu0 %930
  %934 = vset.pattern.permute.xlu0 0
  %935 = vperm.xlu0 %934, %v913
  %v936 = vpop.permute.xlu0 %935
  %939 = vset.pattern.permute.xlu0 0
  %940 = vperm.xlu0 %939, %v914
  %v941 = vpop.permute.xlu0 %940
  %944 = vset.pattern.permute.xlu0 0
  %945 = vperm.xlu0 %944, %v915
  %v946 = vpop.permute.xlu0 %945
  %949 = vset.pattern.permute.xlu0 0
  %950 = vperm.xlu0 %949, %v916
  %v951 = vpop.permute.xlu0 %950
  %954 = vset.pattern.permute.xlu0 0
  %955 = vperm.xlu0 %954, %v917
  %v956 = vpop.permute.xlu0 %955
  %958 = vmatprep.subr.mxu0 %v871
  %959 = vmatpush1.msra.mxu0 %v870
  %960 = vmatprep.subr.mxu0 %v873
  %961 = vmatpush1.msra.mxu0 %v872
  %962 = vmatprep.subr.mxu0 %v875
  %963 = vmatpush1.msra.mxu0 %v874
  %964 = vmatprep.subr.mxu0 %v877
  %965 = vmatpush1.msra.mxu0 %v876
  %966 = vmatprep.subr.mxu0 %v879
  %967 = vmatpush1.msra.mxu0 %v878
  %968 = vmatprep.subr.mxu0 %v881
  %969 = vmatpush1.msra.mxu0 %v880
  %970 = vmatprep.subr.mxu0 %v883
  %971 = vmatpush1.msra.mxu0 %v882
  %972 = vmatprep.subr.mxu0 %v885
  %973 = vmatpush1.msra.mxu0 %v884
  %974 = vmatprep.subr.mxu0 %v887
  %975 = vmatpush1.msra.mxu0 %v886
  %976 = vmatprep.subr.mxu0 %v889
  %977 = vmatpush1.msra.mxu0 %v888
  %978 = vmatprep.subr.mxu0 %v891
  %979 = vmatpush1.msra.mxu0 %v890
  %980 = vmatprep.subr.mxu0 %v893
  %981 = vmatpush1.msra.mxu0 %v892
  %982 = vmatprep.subr.mxu0 %v895
  %983 = vmatpush1.msra.mxu0 %v894
  %984 = vmatprep.subr.mxu0 %v897
  %985 = vmatpush1.msra.mxu0 %v896
  %986 = vmatprep.subr.mxu0 %v899
  %987 = vmatpush1.msra.mxu0 %v898
  %988 = vmatprep.subr.mxu0 %v901
  %989 = vmatpush1.msra.mxu0 %v900
  %990 = vmatprep.subr.mxu0 0.0
  %991 = vmatpush1.msra.mxu0 0.0
  %992 = vmatprep.subr.mxu0 0.0
  %993 = vmatpush1.msra.mxu0 0.0
  %994 = vmatprep.subr.mxu0 0.0
  %995 = vmatpush1.msra.mxu0 0.0
  %996 = vmatprep.subr.mxu0 0.0
  %997 = vmatpush1.msra.mxu0 0.0
  %998 = vmatprep.subr.mxu0 0.0
  %999 = vmatpush1.msra.mxu0 0.0
  %1000 = vmatprep.subr.mxu0 0.0
  %1001 = vmatpush1.msra.mxu0 0.0
  %1002 = vmatprep.subr.mxu0 0.0
  %1003 = vmatpush1.msra.mxu0 0.0
  %1004 = vmatprep.subr.mxu0 0.0
  %1005 = vmatpush1.msra.mxu0 0.0
  %1006 = vmatprep.subr.mxu0 0.0
  %1007 = vmatpush1.msra.mxu0 0.0
  %1008 = vmatprep.subr.mxu0 0.0
  %1009 = vmatpush1.msra.mxu0 0.0
  %1010 = vmatprep.subr.mxu0 0.0
  %1011 = vmatpush1.msra.mxu0 0.0
  %1012 = vmatprep.subr.mxu0 0.0
  %1013 = vmatpush1.msra.mxu0 0.0
  %1014 = vmatprep.subr.mxu0 0.0
  %1015 = vmatpush1.msra.mxu0 0.0
  %1016 = vmatprep.subr.mxu0 0.0
  %1017 = vmatpush1.msra.mxu0 0.0
  %1018 = vmatprep.subr.mxu0 0.0
  %1019 = vmatpush1.msra.mxu0 0.0
  %1020 = vmatprep.subr.mxu0 0.0
  %1021 = vmatpush1.msra.mxu0 0.0
  %1022 = vmatprep.mubr.f32.mxu0 0.0
  %1023 = vmatmul.mubr.f32.gmra.mrb[0].mxu0 %v902
  %v1024 = vpop.f32.mrb[0].mxu0
  %v1025 = vadd.f32 %v921, %v1024
  %v1026 = vpop.f32.mrb[0].mxu0
  %v1027 = vadd.f32 %v921, %v1026
  %1028 = vmatprep.mubr.f32.mxu0 0.0
  %1029 = vmatmul.mubr.f32.gmra.mrb[0].mxu0 %v903
  %v1030 = vpop.f32.mrb[0].mxu0
  %v1031 = vadd.f32 %v926, %v1030
  %v1032 = vpop.f32.mrb[0].mxu0
  %v1033 = vadd.f32 %v926, %v1032
  %1034 = vmatprep.mubr.f32.mxu0 0.0
  %1035 = vmatmul.mubr.f32.gmra.mrb[0].mxu0 %v904
  %v1036 = vpop.f32.mrb[0].mxu0
  %v1037 = vadd.f32 %v931, %v1036
  %v1038 = vpop.f32.mrb[0].mxu0
  %v1039 = vadd.f32 %v931, %v1038
  %1040 = vmatprep.mubr.f32.mxu0 0.0
  %1041 = vmatmul.mubr.f32.gmra.mrb[0].mxu0 %v905
  %v1042 = vpop.f32.mrb[0].mxu0
  %v1043 = vadd.f32 %v936, %v1042
  %v1044 = vpop.f32.mrb[0].mxu0
  %v1045 = vadd.f32 %v936, %v1044
  %1046 = vmatprep.mubr.f32.mxu0 0.0
  %1047 = vmatmul.mubr.f32.gmra.mrb[0].mxu0 %v906
  %v1048 = vpop.f32.mrb[0].mxu0
  %v1049 = vadd.f32 %v941, %v1048
  %v1050 = vpop.f32.mrb[0].mxu0
  %v1051 = vadd.f32 %v941, %v1050
  %1052 = vmatprep.mubr.f32.mxu0 0.0
  %1053 = vmatmul.mubr.f32.gmra.mrb[0].mxu0 %v907
  %v1054 = vpop.f32.mrb[0].mxu0
  %v1055 = vadd.f32 %v946, %v1054
  %v1056 = vpop.f32.mrb[0].mxu0
  %v1057 = vadd.f32 %v946, %v1056
  %1058 = vmatprep.mubr.f32.mxu0 0.0
  %1059 = vmatmul.mubr.f32.gmra.mrb[0].mxu0 %v908
  %v1060 = vpop.f32.mrb[0].mxu0
  %v1061 = vadd.f32 %v951, %v1060
  %v1062 = vpop.f32.mrb[0].mxu0
  %v1063 = vadd.f32 %v951, %v1062
  %1064 = vmatprep.mubr.f32.mxu0 0.0
  %1065 = vmatmul.mubr.f32.gmra.mrb[0].mxu0 %v909
  %v1066 = vpop.f32.mrb[0].mxu0
  %v1067 = vadd.f32 %v956, %v1066
  %v1068 = vpop.f32.mrb[0].mxu0
  %v1069 = vadd.f32 %v956, %v1068
  %1070 = vdwg.mxu0
  %v1071 = vmax.f32 %v1025, 0.0
  %v1072 = vmax.f32 %v1027, 0.0
  %v1073 = vmax.f32 %v1031, 0.0
  %v1074 = vmax.f32 %v1033, 0.0
  %v1075 = vmax.f32 %v1037, 0.0
  %v1076 = vmax.f32 %v1039, 0.0
  %v1077 = vmax.f32 %v1043, 0.0
  %v1078 = vmax.f32 %v1045, 0.0
  %v1079 = vmax.f32 %v1049, 0.0
  %v1080 = vmax.f32 %v1051, 0.0
  %v1081 = vmax.f32 %v1055, 0.0
  %v1082 = vmax.f32 %v1057, 0.0
  %v1083 = vmax.f32 %v1061, 0.0
  %v1084 = vmax.f32 %v1063, 0.0
  %v1085 = vmax.f32 %v1067, 0.0
  %v1086 = vmax.f32 %v1069, 0.0
  %v1087 = vld [vmem:[%s7] sm:$0x1]
  %v1088 = vld [vmem:[#allocation2] sm:$0x1]
  %1090 = vset.pattern.permute.xlu0 0
  %1091 = vperm.xlu0 %1090, %v1088
  %v1092 = vpop.permute.xlu0 %1091
  %v1094 = vlaneseq
  %v1095 = vshrl.u32 %v1094, 7
  %v1096 = vsub.s32 0, %v1095
  %v1097 = vrot.slane %v1092, %v1096
  %vm1098 = vcmask 523264
  %v1100 = vsel %vm1098, %v1087, 0
  %1102 = vmatprep.subr.mxu0 %v1072
  %1103 = vmatpush1.msra.mxu0 %v1071
  %1104 = vmatprep.subr.mxu0 %v1074
  %1105 = vmatpush1.msra.mxu0 %v1073
  %1106 = vmatprep.subr.mxu0 %v1076
  %1107 = vmatpush1.msra.mxu0 %v1075
  %1108 = vmatprep.subr.mxu0 %v1078
  %1109 = vmatpush1.msra.mxu0 %v1077
  %1110 = vmatprep.subr.mxu0 %v1080
  %1111 = vmatpush1.msra.mxu0 %v1079
  %1112 = vmatprep.subr.mxu0 %v1082
  %1113 = vmatpush1.msra.mxu0 %v1081
  %1114 = vmatprep.subr.mxu0 %v1084
  %1115 = vmatpush1.msra.mxu0 %v1083
  %1116 = vmatprep.subr.mxu0 %v1086
  %1117 = vmatpush1.msra.mxu0 %v1085
  %1118 = vmatprep.subr.mxu0 0.0
  %1119 = vmatpush1.msra.mxu0 0.0
  %1120 = vmatprep.subr.mxu0 0.0
  %1121 = vmatpush1.msra.mxu0 0.0
  %1122 = vmatprep.subr.mxu0 0.0
  %1123 = vmatpush1.msra.mxu0 0.0
  %1124 = vmatprep.subr.mxu0 0.0
  %1125 = vmatpush1.msra.mxu0 0.0
  %1126 = vmatprep.subr.mxu0 0.0
  %1127 = vmatpush1.msra.mxu0 0.0
  %1128 = vmatprep.subr.mxu0 0.0
  %1129 = vmatpush1.msra.mxu0 0.0
  %1130 = vmatprep.subr.mxu0 0.0
  %1131 = vmatpush1.msra.mxu0 0.0
  %1132 = vmatprep.subr.mxu0 0.0
  %1133 = vmatpush1.msra.mxu0 0.0
  %1134 = vmatprep.subr.mxu0 0.0
  %1135 = vmatpush1.msra.mxu0 0.0
  %1136 = vmatprep.subr.mxu0 0.0
  %1137 = vmatpush1.msra.mxu0 0.0
  %1138 = vmatprep.subr.mxu0 0.0
  %1139 = vmatpush1.msra.mxu0 0.0
  %1140 = vmatprep.subr.mxu0 0.0
  %1141 = vmatpush1.msra.mxu0 0.0
  %1142 = vmatprep.subr.mxu0 0.0
  %1143 = vmatpush1.msra.mxu0 0.0
  %1144 = vmatprep.subr.mxu0 0.0
  %1145 = vmatpush1.msra.mxu0 0.0
  %1146 = vmatprep.subr.mxu0 0.0
  %1147 = vmatpush1.msra.mxu0 0.0
  %1148 = vmatprep.subr.mxu0 0.0
  %1149 = vmatpush1.msra.mxu0 0.0
  %1150 = vmatprep.subr.mxu0 0.0
  %1151 = vmatpush1.msra.mxu0 0.0
  %1152 = vmatprep.subr.mxu0 0.0
  %1153 = vmatpush1.msra.mxu0 0.0
  %1154 = vmatprep.subr.mxu0 0.0
  %1155 = vmatpush1.msra.mxu0 0.0
  %1156 = vmatprep.subr.mxu0 0.0
  %1157 = vmatpush1.msra.mxu0 0.0
  %1158 = vmatprep.subr.mxu0 0.0
  %1159 = vmatpush1.msra.mxu0 0.0
  %1160 = vmatprep.subr.mxu0 0.0
  %1161 = vmatpush1.msra.mxu0 0.0
  %1162 = vmatprep.subr.mxu0 0.0
  %1163 = vmatpush1.msra.mxu0 0.0
  %1164 = vmatprep.subr.mxu0 0.0
  %1165 = vmatpush1.msra.mxu0 0.0
  %1166 = vmatprep.mubr.f32.mxu0 0.0
  %1167 = vmatmul.mubr.f32.gmra.mrb[0].mxu0 %v1100
  %v1168 = vpop.f32.mrb[0].mxu0
  %v1169 = vadd.f32 %v1097, %v1168
  %v1170 = vpop.f32.mrb[0].mxu0
  %v1171 = vadd.f32 %v1097, %v1170
  %1172 = vdwg.mxu0
  %v1175 = vcombine.low %v1169, %v1171
  %v1177 = vunpack.c.l.s4 1966171168
  %v1178 = vunpack.c.0.s8 %v1177
  %v1179 = vlaneseq
  %v1180 = vshrl.u32 %v1179, 7
  %v1181 = vsub.s32 %v1178, %v1180
  %v1182 = vrot.slane %v1175, %v1181
  %v1184 = vunpack.c.l.s4 1966171168
  %v1185 = vunpack.c.0.s8 %v1184
  %v1186 = vlaneseq
  %v1187 = vshrl.u32 %v1186, 7
  %v1188 = vsub.s32 %v1185, %v1187
  %v1189 = vrot.slane %v1182, %v1188
  %v1191 = vlaneseq
  %vm1192 = vcmp.ge.s32.totalorder %v1191, 0
  %vm1193 = vcmp.lt.s32.totalorder %v1191, 256
  %vm1194 = vmand %vm1192, %vm1193
  %1195 = vst.msk [vmem:[%s9] sm:$0x3] %vm1194, %v1189
  // Predicated region
  $region38: #{qfunction_forward.1} parent=0 // pred_check
    _
  $region39: #{qfunction_forward.1} parent=0 // pred_check_branch
    %1197 = sbr.rel (0) target = $region41
  $region40: #{qfunction_forward.1} parent=0 // pred_region
    _
  $region41: #{qfunction_forward.1} parent=0 // pred_fallthru
    _
  // Predicated region
  $region42: #{qfunction_forward.1} parent=0 // pred_check
    _
  $region43: #{qfunction_forward.1} parent=0 // pred_check_branch
    %1199 = sbr.rel (0) target = $region45
  $region44: #{qfunction_forward.1} parent=0 // pred_region
    _
  $region45: #{qfunction_forward.1} parent=0 // pred_fallthru
    _

</llo_original>
